<compile_context>
chip_gen: v7x
topology: tpu7x:2x2x1
jax: 0.10.0
libtpu: 0.0.40
codegen_flags: <defaults>
</compile_context>

<pallas_src>
import functools
import math

import jax
import jax.numpy as jnp
from jax import lax
from jax.experimental import pallas as pl
from jax.experimental.pallas import tpu as pltpu


def _seq2vec_attn_kernel(lens_ref,        # VMEM (TB, 1, 1) int32
                         seq_ref,         # VMEM (TB, S, D) cdt (f32 or bf16)
                         wk_fold_ref,     # VMEM (D, H) cdt  folded K-proj (query, head-sum, 1/sqrt(dh) baked in)
                         bk_fold_ref,     # VMEM (1, H) f32
                         wv_t_ref,        # VMEM (D, D) cdt
                         wo_t_ref,        # VMEM (D, D) cdt
                         bo_fold_ref,     # VMEM (1, D) f32  bo + bv @ Wo^T
                         expand_t_ref,    # VMEM (H, D) cdt  head-broadcast matrix
                         out_ref):        # VMEM (TB, D) f32
    TB, S, D = seq_ref.shape
    H = wk_fold_ref.shape[1]
    cdt = seq_ref.dtype

    x = seq_ref[...].reshape(TB * S, D)

    # scores[b*S+s, h] = <q_h, (x Wk^T + bk)_h> / sqrt(dh); everything that is
    # batch-invariant is folded into (D,H)/(1,H) constants in the wrapper.
    scores = (jnp.dot(x, wk_fold_ref[...], preferred_element_type=jnp.float32)
              + bk_fold_ref[...]).reshape(TB, S, H)

    # Length mask: large finite negative keeps seq_len==0 / padded rows NaN-free.
    pos = lax.broadcasted_iota(jnp.int32, (TB, S, H), 1)
    scores = jnp.where(pos < lens_ref[...], scores, -1e30)

    # Softmax over the sequence axis, per (batch row, head), in f32.
    m = jnp.max(scores, axis=1, keepdims=True)                         # (TB, 1, H)
    e = jnp.exp(scores - m)
    w = e / jnp.sum(e, axis=1, keepdims=True)                          # (TB, S, H)

    # V projection (bv folded into the output bias) + per-head weighted sum.
    v = jnp.dot(x, wv_t_ref[...], preferred_element_type=jnp.float32)   # (TB*S, D)
    wexp = jnp.dot(w.reshape(TB * S, H).astype(cdt), expand_t_ref[...],
                   preferred_element_type=jnp.float32)                  # (TB*S, D)
    # TODO(synk): for S >~ 128 switch to a lane-dense (TB*H, S) softmax and an
    # S-contracted weighted sum instead of the K=H expand matmul + sublane reduce.
    att = jnp.sum((wexp * v).reshape(TB, S, D), axis=1)                 # (TB, D)

    out = (jnp.dot(att.astype(cdt), wo_t_ref[...],
                   preferred_element_type=jnp.float32) + bo_fold_ref[...])
    out_ref[...] = out.astype(out_ref.dtype)


def _tpu_config():
    """Per-generation defaults (compute dtype, VMEM caps, MXU rows, #TCs)."""
    try:
        kind = jax.devices()[0].device_kind.lower()
    except Exception:
        kind = ""
    if "v7" in kind or "tpu7" in kind:
        gen = "v7x"
    elif "v6" in kind or "trillium" in kind:
        gen = "v6e"
    elif "v5" in kind and ("lite" in kind or "v5e" in kind):
        gen = "v5e"
    elif "v5" in kind or "v4" in kind:
        gen = "big"          # v4 / v5p: 128 MiB VMEM, megacore
    else:
        gen = None
    table = {
        "v7x": dict(tile_budget=int(0.75 * (52 << 20)), vmem_limit=52 << 20,
                    mxu_rows=256, bf16_default=True, two_tc=True),
        "v6e": dict(tile_budget=int(0.75 * (100 << 20)), vmem_limit=100 << 20,
                    mxu_rows=256, bf16_default=True, two_tc=False),
        "v5e": dict(tile_budget=int(0.75 * (100 << 20)), vmem_limit=100 << 20,
                    mxu_rows=128, bf16_default=True, two_tc=False),
        "big": dict(tile_budget=int(0.75 * (96 << 20)), vmem_limit=96 << 20,
                    mxu_rows=128, bf16_default=True, two_tc=True),
        None:  dict(tile_budget=12 << 20, vmem_limit=None,
                    mxu_rows=128, bf16_default=False, two_tc=False),
    }
    return table[gen]


def _choose_block_b(B, S, D, H, cdt, cfg):
    """Pick the batch tile: as big as the VMEM budget allows, at least enough
    rows to fill the MXU M-dim, 8-aligned, and >=2 grid steps on 2-TC parts."""
    ws = jnp.dtype(cdt).itemsize
    # Per-batch-row bytes: double-buffered seq tile (cdt) + f32 intermediates
    # (v, w-expanded, product) + softmax stats + out tile.
    per_row = S * D * (2 * ws + 3 * 4) + 12 * S * H + 16 * D
    fixed = (2 * D * D + 2 * D * H) * ws + 8 * D * 4 + (2 << 20)
    cap = max(1, (cfg["tile_budget"] - fixed) // per_row)
    floor = -(-cfg["mxu_rows"] // S)          # TB*S >= MXU rows
    tb = min(B, 512, max(cap, floor))
    if B > 8:
        tb = max(8, (tb // 8) * 8)            # sublane-aligned out / lens blocks
    else:
        tb = B                                # single block == full (small) batch
    if cfg["two_tc"] and B >= 16 and -(-B // tb) < 2:
        tb = max(8, ((-(-B // 2)) + 7) // 8 * 8)   # >=2 steps for 2 TensorCores
    return tb


@functools.partial(jax.jit,
                   static_argnames=("n_heads", "tb", "compute_dtype", "vmem_limit"))
def _seq2vec_attention_impl(seq, seq_len, params, *, n_heads, tb, compute_dtype,
                            vmem_limit):
    B, S, D = seq.shape
    H = n_heads
    dh = D // H
    scale = 1.0 / math.sqrt(dh)
    cdt = compute_dtype

    TB = tb
    Bp = pl.cdiv(B, TB) * TB

    # seq is DMA'd in the compute dtype (halves HBM traffic + VMEM when bf16).
    seq_c = seq.astype(cdt)
    seq_p = seq_c if Bp == B else jnp.pad(seq_c, ((0, Bp - B), (0, 0), (0, 0)))
    lens3 = jnp.asarray(seq_len, jnp.int32).reshape(B, 1, 1)
    lens_p = lens3 if Bp == B else jnp.pad(lens3, ((0, Bp - B), (0, 0), (0, 0)))

    # ---- batch-invariant folds (constant-folded under jit) ----
    qp = params["q"].reshape(1, D) @ params["wq"].T + params["bq"].reshape(1, D)
    expand = jnp.repeat(jnp.eye(H, dtype=jnp.float32), dh, axis=0)      # (D, H)
    wk_fold = ((params["wk"].T * qp) @ expand * scale).astype(cdt)      # (D, H)
    bk_fold = (params["bk"].reshape(1, D) * qp) @ expand * scale        # (1, H) f32
    wv_t = params["wv"].T.astype(cdt)
    wo_t = params["wo"].T.astype(cdt)
    # Softmax weights sum to 1 per (row, head) even for fully-masked rows, so
    # "+bv" commutes with the weighted sum and folds into the output bias.
    bo_fold = (params["bv"].reshape(1, D) @ params["wo"].T
               + params["bo"].reshape(1, D))                            # (1, D) f32
    expand_t = expand.T.astype(cdt)                                     # (H, D)

    const2 = lambda b: (0, 0)
    def const_spec(shape):
        # Constant across the grid -> single buffer (no double-buffering).
        return pl.BlockSpec(shape, const2, pipeline_mode=pl.Buffered(1))

    kernel = pl.pallas_call(
        _seq2vec_attn_kernel,
        out_shape=jax.ShapeDtypeStruct((Bp, D), jnp.float32),
        grid=(Bp // TB,),
        in_specs=[
            pl.BlockSpec((TB, 1, 1), lambda b: (b, 0, 0)),   # seq_len
            pl.BlockSpec((TB, S, D), lambda b: (b, 0, 0)),   # seq tile (cdt)
            const_spec((D, H)),                              # wk_fold
            const_spec((1, H)),                              # bk_fold
            const_spec((D, D)),                              # Wv^T
            const_spec((D, D)),                              # Wo^T
            const_spec((1, D)),                              # bo_fold
            const_spec((H, D)),                              # expand^T
        ],
        out_specs=pl.BlockSpec((TB, D), lambda b: (b, 0)),
        compiler_params=pltpu.CompilerParams(
            dimension_semantics=("parallel",),               # batch rows independent
            vmem_limit_bytes=vmem_limit),
    )
    out = kernel(lens_p, seq_p, wk_fold, bk_fold, wv_t, wo_t, bo_fold, expand_t)
    return out[:B]


def seq2vec_attention(seq, seq_len, params, *, n_heads, block_b=None,
                      compute_dtype=None):
    """Seq2Vec forward with pooling='attention'.

    seq:     (B, S, D) float32 (or bfloat16)
    seq_len: (B,)      int32
    returns: (B, D)    float32
    """
    B, S, D = seq.shape
    assert D % n_heads == 0
    cfg = _tpu_config()
    if compute_dtype is None:
        compute_dtype = jnp.bfloat16 if cfg["bf16_default"] else jnp.float32
    if block_b is None:
        tb = _choose_block_b(B, S, D, n_heads, compute_dtype, cfg)
    else:
        tb = int(block_b)
    # Block legality: either the block covers the whole (padded) batch, or its
    # sublane dim is a multiple of 8.
    if tb >= B:
        tb = B
    elif tb % 8:
        tb = ((tb + 7) // 8) * 8
        if tb >= B:
            tb = B
    return _seq2vec_attention_impl(seq, seq_len, params, n_heads=n_heads, tb=tb,
                                   compute_dtype=compute_dtype,
                                   vmem_limit=cfg["vmem_limit"])


def seq2vec_reference(seq, seq_len, params, *, n_heads):
    """Pure-JAX replica of the PyTorch forward (eval mode) for verification."""
    B, S, D = seq.shape
    dh = D // n_heads
    q = jnp.broadcast_to(params["q"].reshape(1, 1, D), (B, 1, D))
    qp = q @ params["wq"].T + params["bq"]
    k = seq @ params["wk"].T + params["bk"]
    v = seq @ params["wv"].T + params["bv"]
    qh = qp.reshape(B, 1, n_heads, dh).transpose(0, 2, 1, 3)
    kh = k.reshape(B, S, n_heads, dh).transpose(0, 2, 1, 3)
    vh = v.reshape(B, S, n_heads, dh).transpose(0, 2, 1, 3)
    score = jnp.einsum("bhqd,bhkd->bhqk", qh, kh) / math.sqrt(dh)
    mask = (jnp.arange(S)[None, :] < seq_len[:, None])
    score = jnp.where(mask[:, None, None, :], score, -jnp.inf)
    w = jax.nn.softmax(score, axis=-1)
    att = jnp.einsum("bhqk,bhkd->bhqd", w, vh)
    att = att.transpose(0, 2, 1, 3).reshape(B, 1, D)
    out = att @ params["wo"].T + params["bo"]
    return out[:, 0, :]


def init_params(key, dim_in, dim_out):
    keys = jax.random.split(key, 9)
    std = 1.0 / math.sqrt(dim_in)
    return {
        "wq": jax.random.uniform(keys[0], (dim_out, dim_in), jnp.float32, -std, std),
        "bq": jax.random.uniform(keys[1], (dim_out,), jnp.float32, -std, std),
        "wk": jax.random.uniform(keys[2], (dim_out, dim_in), jnp.float32, -std, std),
        "bk": jax.random.uniform(keys[3], (dim_out,), jnp.float32, -std, std),
        "wv": jax.random.uniform(keys[4], (dim_out, dim_in), jnp.float32, -std, std),
        "bv": jax.random.uniform(keys[5], (dim_out,), jnp.float32, -std, std),
        "wo": jax.random.uniform(keys[6], (dim_out, dim_out), jnp.float32, -std, std),
        "bo": jax.random.uniform(keys[7], (dim_out,), jnp.float32, -std, std),
        "q": jax.random.normal(keys[8], (1, 1, dim_out), jnp.float32),  # nn.init.normal_
    }


if __name__ == "__main__":
    # Small shapes consistent with the module.  The attention-pooling path of
    # Seq2Vec feeds its own (dim_out)-sized query through linear_q(dim_in, ...),
    # which only type-checks when dim_in == dim_out.
    B, S, D, H = 2, 8, 32, 4

    key = jax.random.PRNGKey(0)
    k_seq, k_par = jax.random.split(key)
    seq = jax.random.normal(k_seq, (B, S, D), dtype=jnp.float32)
    seq_len = jnp.array([8, 5], dtype=jnp.int32)
    params = init_params(k_par, D, D)

    # Run with the per-generation defaults (bf16 MXU path on v5e/v6e/v7x).
    out = seq2vec_attention(seq, seq_len, params, n_heads=H)
    out = jax.block_until_ready(out)

    ref = seq2vec_reference(seq, seq_len, params, n_heads=H)
    used_bf16 = _tpu_config()["bf16_default"]
    tol = 3e-2 if used_bf16 else 1e-4           # relax for bf16 score/V quantization
    assert out.shape == (B, D)
    assert jnp.allclose(out, ref, atol=tol, rtol=tol), (
        f"max abs err {jnp.max(jnp.abs(out - ref))}")

    print("KERNEL_OK")
</pallas_src>

<mosaic_0001>
module attributes {stable_mosaic.version = 11 : i64} {
  func.func @_seq2vec_attn_kernel(%arg0: i32, %arg1: memref<2x1x1xi32, #tpu.memory_space<vmem>>, %arg2: memref<2x8x32xf32, #tpu.memory_space<vmem>>, %arg3: memref<32x4xf32, #tpu.memory_space<vmem>>, %arg4: memref<1x4xf32, #tpu.memory_space<vmem>>, %arg5: memref<32x32xf32, #tpu.memory_space<vmem>>, %arg6: memref<32x32xf32, #tpu.memory_space<vmem>>, %arg7: memref<1x32xf32, #tpu.memory_space<vmem>>, %arg8: memref<4x32xf32, #tpu.memory_space<vmem>>, %arg9: memref<2x32xf32, #tpu.memory_space<vmem>>) attributes {dimension_semantics = [#tpu.dimension_semantics<parallel>], iteration_bounds = array<i64: 1>, scalar_prefetch = 0 : i64, scratch_operands = 0 : i64, tpu.core_type = #tpu.core_type<tc>, window_params = [{transform_indices = @transform_0, window_bounds = array<i64: 2, 1, 1>}, {transform_indices = @transform_1, window_bounds = array<i64: 2, 8, 32>}, {pipeline_mode = #tpu.pipeline_mode<synchronous>, transform_indices = @transform_2, window_bounds = array<i64: 32, 4>}, {pipeline_mode = #tpu.pipeline_mode<synchronous>, transform_indices = @transform_3, window_bounds = array<i64: 1, 4>}, {pipeline_mode = #tpu.pipeline_mode<synchronous>, transform_indices = @transform_4, window_bounds = array<i64: 32, 32>}, {pipeline_mode = #tpu.pipeline_mode<synchronous>, transform_indices = @transform_5, window_bounds = array<i64: 32, 32>}, {pipeline_mode = #tpu.pipeline_mode<synchronous>, transform_indices = @transform_6, window_bounds = array<i64: 1, 32>}, {pipeline_mode = #tpu.pipeline_mode<synchronous>, transform_indices = @transform_7, window_bounds = array<i64: 4, 32>}, {transform_indices = @transform_8, window_bounds = array<i64: 2, 32>}]} {
    %c0 = arith.constant 0 : index
    %c0_0 = arith.constant 0 : index
    %c0_1 = arith.constant 0 : index
    %0 = vector.load %arg2[%c0, %c0_0, %c0_1] : memref<2x8x32xf32, #tpu.memory_space<vmem>>, vector<2x8x32xf32>
    %1 = vector.shape_cast %0 : vector<2x8x32xf32> to vector<16x32xf32>
    %c0_2 = arith.constant 0 : index
    %c0_3 = arith.constant 0 : index
    %2 = vector.load %arg3[%c0_2, %c0_3] : memref<32x4xf32, #tpu.memory_space<vmem>>, vector<32x4xf32>
    %cst = arith.constant dense<0.000000e+00> : vector<16x4xf32>
    %3 = tpu.matmul %1, %2, %cst {dimension_numbers = #tpu.dot_dimension_numbers<[1], [0], [0], [1], [0, 0, 1, 1], [], []>} : vector<16x32xf32>, vector<32x4xf32>, vector<16x4xf32> -> vector<16x4xf32>
    %c0_4 = arith.constant 0 : index
    %c0_5 = arith.constant 0 : index
    %4 = vector.load %arg4[%c0_4, %c0_5] : memref<1x4xf32, #tpu.memory_space<vmem>>, vector<1x4xf32>
    %5 = vector.broadcast %4 : vector<1x4xf32> to vector<16x4xf32>
    %6 = arith.addf %3, %5 : vector<16x4xf32>
    %7 = vector.shape_cast %6 : vector<16x4xf32> to vector<2x8x4xf32>
    %8 = tpu.iota {dimensions = array<i32: 1>} : vector<2x8x4xi32>
    %c0_6 = arith.constant 0 : index
    %c0_7 = arith.constant 0 : index
    %c0_8 = arith.constant 0 : index
    %9 = vector.load %arg1[%c0_6, %c0_7, %c0_8] : memref<2x1x1xi32, #tpu.memory_space<vmem>>, vector<2x1x1xi32>
    %10 = vector.broadcast %9 : vector<2x1x1xi32> to vector<2x8x4xi32>
    %11 = arith.cmpi slt, %8, %10 : vector<2x8x4xi32>
    %cst_9 = arith.constant -1.000000e+30 : f32
    %12 = vector.broadcast %cst_9 : f32 to vector<2x8x4xf32>
    %13 = arith.select %11, %7, %12 : vector<2x8x4xi1>, vector<2x8x4xf32>
    %cst_10 = arith.constant dense<0xFF800000> : vector<2x4xf32>
    %14 = vector.multi_reduction <maximumf>, %13, %cst_10 [1] : vector<2x8x4xf32> to vector<2x4xf32>
    %15 = vector.shape_cast %14 : vector<2x4xf32> to vector<2x1x4xf32>
    %16 = vector.broadcast %15 : vector<2x1x4xf32> to vector<2x8x4xf32>
    %17 = arith.subf %13, %16 : vector<2x8x4xf32>
    %18 = math.exp %17 : vector<2x8x4xf32>
    %cst_11 = arith.constant dense<0.000000e+00> : vector<2x4xf32>
    %19 = vector.multi_reduction <add>, %18, %cst_11 [1] : vector<2x8x4xf32> to vector<2x4xf32>
    %20 = vector.shape_cast %19 : vector<2x4xf32> to vector<2x1x4xf32>
    %21 = vector.broadcast %20 : vector<2x1x4xf32> to vector<2x8x4xf32>
    %22 = arith.divf %18, %21 : vector<2x8x4xf32>
    %c0_12 = arith.constant 0 : index
    %c0_13 = arith.constant 0 : index
    %23 = vector.load %arg5[%c0_12, %c0_13] : memref<32x32xf32, #tpu.memory_space<vmem>>, vector<32x32xf32>
    %cst_14 = arith.constant dense<0.000000e+00> : vector<16x32xf32>
    %24 = tpu.matmul %1, %23, %cst_14 {dimension_numbers = #tpu.dot_dimension_numbers<[1], [0], [0], [1], [0, 0, 1, 1], [], []>} : vector<16x32xf32>, vector<32x32xf32>, vector<16x32xf32> -> vector<16x32xf32>
    %25 = vector.shape_cast %22 : vector<2x8x4xf32> to vector<16x4xf32>
    %c0_15 = arith.constant 0 : index
    %c0_16 = arith.constant 0 : index
    %26 = vector.load %arg8[%c0_15, %c0_16] : memref<4x32xf32, #tpu.memory_space<vmem>>, vector<4x32xf32>
    %cst_17 = arith.constant dense<0.000000e+00> : vector<16x32xf32>
    %27 = tpu.matmul %25, %26, %cst_17 {dimension_numbers = #tpu.dot_dimension_numbers<[1], [0], [0], [1], [0, 0, 1, 1], [], []>} : vector<16x4xf32>, vector<4x32xf32>, vector<16x32xf32> -> vector<16x32xf32>
    %28 = arith.mulf %27, %24 : vector<16x32xf32>
    %29 = vector.shape_cast %28 : vector<16x32xf32> to vector<2x8x32xf32>
    %cst_18 = arith.constant dense<0.000000e+00> : vector<2x32xf32>
    %30 = vector.multi_reduction <add>, %29, %cst_18 [1] : vector<2x8x32xf32> to vector<2x32xf32>
    %c0_19 = arith.constant 0 : index
    %c0_20 = arith.constant 0 : index
    %31 = vector.load %arg6[%c0_19, %c0_20] : memref<32x32xf32, #tpu.memory_space<vmem>>, vector<32x32xf32>
    %cst_21 = arith.constant dense<0.000000e+00> : vector<2x32xf32>
    %32 = tpu.matmul %30, %31, %cst_21 {dimension_numbers = #tpu.dot_dimension_numbers<[1], [0], [0], [1], [0, 0, 1, 1], [], []>} : vector<2x32xf32>, vector<32x32xf32>, vector<2x32xf32> -> vector<2x32xf32>
    %c0_22 = arith.constant 0 : index
    %c0_23 = arith.constant 0 : index
    %33 = vector.load %arg7[%c0_22, %c0_23] : memref<1x32xf32, #tpu.memory_space<vmem>>, vector<1x32xf32>
    %34 = vector.broadcast %33 : vector<1x32xf32> to vector<2x32xf32>
    %35 = arith.addf %32, %34 : vector<2x32xf32>
    %c0_24 = arith.constant 0 : index
    %c0_25 = arith.constant 0 : index
    %36 = vector.load %arg9[%c0_24, %c0_25] : memref<2x32xf32, #tpu.memory_space<vmem>>, vector<2x32xf32>
    tpu.vector_store %arg9[%c0_24, %c0_25], %35 {strides = array<i32>} : memref<2x32xf32, #tpu.memory_space<vmem>>, vector<2x32xf32>,
    return
  }
  func.func @transform_0(%arg0: i32) -> (i32, i32, i32) {
    %c0_i32 = arith.constant 0 : i32
    %c0_i32_0 = arith.constant 0 : i32
    %c0_i32_1 = arith.constant 0 : i32
    return %arg0, %c0_i32, %c0_i32_0 : i32, i32, i32
  }
  func.func @transform_1(%arg0: i32) -> (i32, i32, i32) {
    %c0_i32 = arith.constant 0 : i32
    %c0_i32_0 = arith.constant 0 : i32
    %c0_i32_1 = arith.constant 0 : i32
    return %arg0, %c0_i32, %c0_i32_0 : i32, i32, i32
  }
  func.func @transform_2(%arg0: i32) -> (i32, i32) {
    %c0_i32 = arith.constant 0 : i32
    %c0_i32_0 = arith.constant 0 : i32
    %c0_i32_1 = arith.constant 0 : i32
    return %c0_i32, %c0_i32_0 : i32, i32
  }
  func.func @transform_3(%arg0: i32) -> (i32, i32) {
    %c0_i32 = arith.constant 0 : i32
    %c0_i32_0 = arith.constant 0 : i32
    %c0_i32_1 = arith.constant 0 : i32
    return %c0_i32, %c0_i32_0 : i32, i32
  }
  func.func @transform_4(%arg0: i32) -> (i32, i32) {
    %c0_i32 = arith.constant 0 : i32
    %c0_i32_0 = arith.constant 0 : i32
    %c0_i32_1 = arith.constant 0 : i32
    return %c0_i32, %c0_i32_0 : i32, i32
  }
  func.func @transform_5(%arg0: i32) -> (i32, i32) {
    %c0_i32 = arith.constant 0 : i32
    %c0_i32_0 = arith.constant 0 : i32
    %c0_i32_1 = arith.constant 0 : i32
    return %c0_i32, %c0_i32_0 : i32, i32
  }
  func.func @transform_6(%arg0: i32) -> (i32, i32) {
    %c0_i32 = arith.constant 0 : i32
    %c0_i32_0 = arith.constant 0 : i32
    %c0_i32_1 = arith.constant 0 : i32
    return %c0_i32, %c0_i32_0 : i32, i32
  }
  func.func @transform_7(%arg0: i32) -> (i32, i32) {
    %c0_i32 = arith.constant 0 : i32
    %c0_i32_0 = arith.constant 0 : i32
    %c0_i32_1 = arith.constant 0 : i32
    return %c0_i32, %c0_i32_0 : i32, i32
  }
  func.func @transform_8(%arg0: i32) -> (i32, i32) {
    %c0_i32 = arith.constant 0 : i32
    %c0_i32_0 = arith.constant 0 : i32
    return %arg0, %c0_i32 : i32, i32
  }
}

</mosaic_0001>

<llo_original>
// kernel: _seq2vec_attention_impl.1
$region0: #{_seq2vec_attention_impl.1}
  #allocation0 [shape = 'u32[]', space=smem, size = 0x4, offset = 0x4, fixed_abs, tag = 'smem constant byte address 0x4 - core index']
  #allocation1 [shape = 'u32[144,128]{1,0:T(1,128)}', space=vmem, size = 0x12000, scoped, tag = 'internal scratch']
  %s0 = inlined_call_operand.vmem [shape: s32[2,1,1], index: 0, kind: input, shape index: {}]
  %s1 = inlined_call_operand.vmem [shape: f32[2,8,32], index: 1, kind: input, shape index: {}]
  %s2 = inlined_call_operand.vmem [shape: f32[32,4], index: 2, kind: input, shape index: {}]
  %s3 = inlined_call_operand.vmem [shape: f32[1,4], index: 3, kind: input, shape index: {}]
  %s4 = inlined_call_operand.vmem [shape: f32[32,32], index: 4, kind: input, shape index: {}]
  %s5 = inlined_call_operand.vmem [shape: f32[32,32], index: 5, kind: input, shape index: {}]
  %s6 = inlined_call_operand.vmem [shape: f32[1,32], index: 6, kind: input, shape index: {}]
  %s7 = inlined_call_operand.vmem [shape: f32[4,32], index: 7, kind: input, shape index: {}]
  %s8 = inlined_call_operand.hbm [shape: f32[2,32], index: 8, kind: output, shape index: {}]
  %s9 = sld [smem:[#allocation0]]
  $region42: #{_seq2vec_attention_impl.1} parent=0
    _
  %s11 = ssub.s32 1, %s9
  %s12 = scalar_select 0, %s11, %s9
  $region1: #{_seq2vec_attention_impl.1} parent=0
    #allocation2 [shape = 'u8[1024]{0}', space=vmem, size = 0x400, scoped, tag = 'output window, operand 0, single buffered']
    #allocation3 [shape = 's32[1]{0}', space=sflag, size = 0x4, scoped, tag = 'scoped memory for _seq2vec_attention_impl.1']
    %13 = vsyncpa [#allocation3], 0
    // Predicated region
    $region2: #{_seq2vec_attention_impl.1} parent=1 // pred_check
      _
    $region3: #{_seq2vec_attention_impl.1} parent=1 // pred_check_branch
      %15 = sbr.rel (0) target = $region5
    $region4: #{_seq2vec_attention_impl.1} parent=1 // pred_region
      _
    $region5: #{_seq2vec_attention_impl.1} parent=1 // pred_fallthru
      _
    // Predicated region
    $region6: #{_seq2vec_attention_impl.1} parent=1 // pred_check
      _
    $region7: #{_seq2vec_attention_impl.1} parent=1 // pred_check_branch
      %17 = sbr.rel (0) target = $region9
    $region8: #{_seq2vec_attention_impl.1} parent=1 // pred_region
      _
    $region9: #{_seq2vec_attention_impl.1} parent=1 // pred_fallthru
      _
    // Predicated region
    $region10: #{_seq2vec_attention_impl.1} parent=1 // pred_check
      _
    $region11: #{_seq2vec_attention_impl.1} parent=1 // pred_check_branch
      %19 = sbr.rel (0) target = $region13
    $region12: #{_seq2vec_attention_impl.1} parent=1 // pred_region
      _
    $region13: #{_seq2vec_attention_impl.1} parent=1 // pred_fallthru
      _
    // Predicated region
    $region14: #{_seq2vec_attention_impl.1} parent=1 // pred_check
      _
    $region15: #{_seq2vec_attention_impl.1} parent=1 // pred_check_branch
      %21 = sbr.rel (0) target = $region17
    $region16: #{_seq2vec_attention_impl.1} parent=1 // pred_region
      _
    $region17: #{_seq2vec_attention_impl.1} parent=1 // pred_fallthru
      _
    // Predicated region
    $region18: #{_seq2vec_attention_impl.1} parent=1 // pred_check
      _
    $region19: #{_seq2vec_attention_impl.1} parent=1 // pred_check_branch
      %23 = sbr.rel (0) target = $region21
    $region20: #{_seq2vec_attention_impl.1} parent=1 // pred_region
      _
    $region21: #{_seq2vec_attention_impl.1} parent=1 // pred_fallthru
      _
    // Predicated region
    $region22: #{_seq2vec_attention_impl.1} parent=1 // pred_check
      _
    $region23: #{_seq2vec_attention_impl.1} parent=1 // pred_check_branch
      %25 = sbr.rel (0) target = $region25
    $region24: #{_seq2vec_attention_impl.1} parent=1 // pred_region
      _
    $region25: #{_seq2vec_attention_impl.1} parent=1 // pred_fallthru
      _
    // Predicated region
    $region26: #{_seq2vec_attention_impl.1} parent=1 // pred_check
      _
    $region27: #{_seq2vec_attention_impl.1} parent=1 // pred_check_branch
      %27 = sbr.rel (0) target = $region29
    $region28: #{_seq2vec_attention_impl.1} parent=1 // pred_region
      _
    $region29: #{_seq2vec_attention_impl.1} parent=1 // pred_fallthru
      _
    // Predicated region
    $region30: #{_seq2vec_attention_impl.1} parent=1 // pred_check
      _
    $region31: #{_seq2vec_attention_impl.1} parent=1 // pred_check_branch
      %29 = sbr.rel (0) target = $region33
    $region32: #{_seq2vec_attention_impl.1} parent=1 // pred_region
      _
    $region33: #{_seq2vec_attention_impl.1} parent=1 // pred_fallthru
      _
    %v30 = vld [vmem:[%s1] sm:$0xff]
    %v31 = vld [vmem:[%s1 + $0x8] sm:$0xff]
    %v32 = vld [vmem:[%s2] sm:$0xff]
    %v33 = vld [vmem:[%s2 + $0x8] sm:$0xff]
    %v34 = vld [vmem:[%s2 + $0x10] sm:$0xff]
    %v35 = vld [vmem:[%s2 + $0x18] sm:$0xff]
    %v36 = vld [vmem:[%s3] sm:$0x1]
    %v38 = vlaneseq
    %v39 = vshrl.u32 %v38, 7
    %v40 = vsub.s32 0, %v39
    %v41 = vrot.slane %v36, %v40
    %vm43 = vcmask 261120
    %v45 = vsel %vm43, %v30, 0
    %v48 = vsel %vm43, %v31, 0
    %50 = vmatprep.subr.mxu0 0.0
    %51 = vmatpush1.msra.mxu0 %v32
    %52 = vmatprep.subr.mxu0 0.0
    %53 = vmatpush1.msra.mxu0 %v33
    %54 = vmatprep.subr.mxu0 0.0
    %55 = vmatpush1.msra.mxu0 %v34
    %56 = vmatprep.subr.mxu0 0.0
    %57 = vmatpush1.msra.mxu0 %v35
    %58 = vmatprep.subr.mxu0 0.0
    %59 = vmatpush1.msra.mxu0 0.0
    %60 = vmatprep.subr.mxu0 0.0
    %61 = vmatpush1.msra.mxu0 0.0
    %62 = vmatprep.subr.mxu0 0.0
    %63 = vmatpush1.msra.mxu0 0.0
    %64 = vmatprep.subr.mxu0 0.0
    %65 = vmatpush1.msra.mxu0 0.0
    %66 = vmatprep.subr.mxu0 0.0
    %67 = vmatpush1.msra.mxu0 0.0
    %68 = vmatprep.subr.mxu0 0.0
    %69 = vmatpush1.msra.mxu0 0.0
    %70 = vmatprep.subr.mxu0 0.0
    %71 = vmatpush1.msra.mxu0 0.0
    %72 = vmatprep.subr.mxu0 0.0
    %73 = vmatpush1.msra.mxu0 0.0
    %74 = vmatprep.subr.mxu0 0.0
    %75 = vmatpush1.msra.mxu0 0.0
    %76 = vmatprep.subr.mxu0 0.0
    %77 = vmatpush1.msra.mxu0 0.0
    %78 = vmatprep.subr.mxu0 0.0
    %79 = vmatpush1.msra.mxu0 0.0
    %80 = vmatprep.subr.mxu0 0.0
    %81 = vmatpush1.msra.mxu0 0.0
    %82 = vmatprep.subr.mxu0 0.0
    %83 = vmatpush1.msra.mxu0 0.0
    %84 = vmatprep.subr.mxu0 0.0
    %85 = vmatpush1.msra.mxu0 0.0
    %86 = vmatprep.subr.mxu0 0.0
    %87 = vmatpush1.msra.mxu0 0.0
    %88 = vmatprep.subr.mxu0 0.0
    %89 = vmatpush1.msra.mxu0 0.0
    %90 = vmatprep.subr.mxu0 0.0
    %91 = vmatpush1.msra.mxu0 0.0
    %92 = vmatprep.subr.mxu0 0.0
    %93 = vmatpush1.msra.mxu0 0.0
    %94 = vmatprep.subr.mxu0 0.0
    %95 = vmatpush1.msra.mxu0 0.0
    %96 = vmatprep.subr.mxu0 0.0
    %97 = vmatpush1.msra.mxu0 0.0
    %98 = vmatprep.subr.mxu0 0.0
    %99 = vmatpush1.msra.mxu0 0.0
    %100 = vmatprep.subr.mxu0 0.0
    %101 = vmatpush1.msra.mxu0 0.0
    %102 = vmatprep.subr.mxu0 0.0
    %103 = vmatpush1.msra.mxu0 0.0
    %104 = vmatprep.subr.mxu0 0.0
    %105 = vmatpush1.msra.mxu0 0.0
    %106 = vmatprep.subr.mxu0 0.0
    %107 = vmatpush1.msra.mxu0 0.0
    %108 = vmatprep.subr.mxu0 0.0
    %109 = vmatpush1.msra.mxu0 0.0
    %110 = vmatprep.subr.mxu0 0.0
    %111 = vmatpush1.msra.mxu0 0.0
    %112 = vmatprep.subr.mxu0 0.0
    %113 = vmatpush1.msra.mxu0 0.0
    %114 = vmatprep.mubr.f32.mxu0 0.0
    %115 = vmatmul.mubr.f32.gmra.mrb[0].mxu0 %v45
    %v116 = vpop.f32.mrb[0].mxu0
    %v117 = vadd.f32 %v41, %v116
    %v118 = vpop.f32.mrb[0].mxu0
    %119 = vmatprep.mubr.f32.mxu0 0.0
    %120 = vmatmul.mubr.f32.gmra.mrb[0].mxu0 %v48
    %v121 = vpop.f32.mrb[0].mxu0
    %v122 = vadd.f32 %v41, %v121
    %v123 = vpop.f32.mrb[0].mxu0
    %124 = vdwg.mxu0
    %v125 = vlaneseq
    %v126 = vshrl.u32 %v125, 7
    %v127 = vld [vmem:[%s0] sm:$0x1]
    %v128 = vld [vmem:[%s0 + $0x1] sm:$0x1]
    %v129 = vlaneseq
    %v130 = vshrl.u32 %v129, 7
    %v131 = vsub.s32 0, %v130
    %v132 = vrot.slane %v127, %v131
    %v133 = vlaneseq
    %v134 = vshrl.u32 %v133, 7
    %v135 = vsub.s32 0, %v134
    %v136 = vrot.slane %v128, %v135
    %137 = vset.pattern.permute.xlu0 0
    %138 = vperm.xlu0 %137, %v132
    %v139 = vpop.permute.xlu0 %138
    %140 = vset.pattern.permute.xlu0 0
    %141 = vperm.xlu0 %140, %v136
    %v142 = vpop.permute.xlu0 %141
    %vm143 = vcmp.lt.s32.totalorder %v126, %v139
    %vm144 = vcmp.lt.s32.totalorder %v126, %v142
    %v145 = vsel %vm143, %v117, -1e+30
    %v146 = vsel %vm144, %v122, -1e+30
    %vm147 = vcmask 31744
    %v148 = vsel %vm147, %v145, -inf
    %v149 = vrot.slane %v148, 4
    %v150 = vmax.f32 %v148, %v149
    %v151 = vrot.slane %v150, 2
    %v152 = vmax.f32 %v150, %v151
    %v153 = vrot.slane %v152, 1
    %v154 = vmax.f32 %v152, %v153
    %v155 = vsel %vm147, %v146, -inf
    %v156 = vrot.slane %v155, 4
    %v157 = vmax.f32 %v155, %v156
    %v158 = vrot.slane %v157, 2
    %v159 = vmax.f32 %v157, %v158
    %v160 = vrot.slane %v159, 1
    %v161 = vmax.f32 %v159, %v160
    %v162 = vsub.f32 %v145, %v154
    %v163 = vsub.f32 %v146, %v161
    %v164 = vmul.f32 %v162, 1.442695
    %v165 = vpow.pop %v164
    %v166 = vmul.f32 %v163, 1.442695
    %v167 = vpow.pop %v166
    %v168 = vsel %vm147, %v165, 0.0
    %v169 = vrot.slane %v168, 4
    %v170 = vadd.f32 %v168, %v169
    %v171 = vrot.slane %v170, 2
    %v172 = vadd.f32 %v170, %v171
    %v173 = vrot.slane %v172, 1
    %v174 = vadd.f32 %v172, %v173
    %v175 = vsel %vm147, %v167, 0.0
    %v176 = vrot.slane %v175, 4
    %v177 = vadd.f32 %v175, %v176
    %v178 = vrot.slane %v177, 2
    %v179 = vadd.f32 %v177, %v178
    %v180 = vrot.slane %v179, 1
    %v181 = vadd.f32 %v179, %v180
    %v182 = vrcp.pop %v174
    %v183 = vmul.f32 %v165, %v182
    %v184 = vrcp.pop %v181
    %v185 = vmul.f32 %v167, %v184
    %v186 = vld [vmem:[%s4] sm:$0xff]
    %v187 = vld [vmem:[%s4 + $0x8] sm:$0xff]
    %v188 = vld [vmem:[%s4 + $0x10] sm:$0xff]
    %v189 = vld [vmem:[%s4 + $0x18] sm:$0xff]
    %190 = vmatprep.subr.mxu0 0.0
    %191 = vmatpush1.msra.mxu0 %v186
    %192 = vmatprep.subr.mxu0 0.0
    %193 = vmatpush1.msra.mxu0 %v187
    %194 = vmatprep.subr.mxu0 0.0
    %195 = vmatpush1.msra.mxu0 %v188
    %196 = vmatprep.subr.mxu0 0.0
    %197 = vmatpush1.msra.mxu0 %v189
    %198 = vmatprep.subr.mxu0 0.0
    %199 = vmatpush1.msra.mxu0 0.0
    %200 = vmatprep.subr.mxu0 0.0
    %201 = vmatpush1.msra.mxu0 0.0
    %202 = vmatprep.subr.mxu0 0.0
    %203 = vmatpush1.msra.mxu0 0.0
    %204 = vmatprep.subr.mxu0 0.0
    %205 = vmatpush1.msra.mxu0 0.0
    %206 = vmatprep.subr.mxu0 0.0
    %207 = vmatpush1.msra.mxu0 0.0
    %208 = vmatprep.subr.mxu0 0.0
    %209 = vmatpush1.msra.mxu0 0.0
    %210 = vmatprep.subr.mxu0 0.0
    %211 = vmatpush1.msra.mxu0 0.0
    %212 = vmatprep.subr.mxu0 0.0
    %213 = vmatpush1.msra.mxu0 0.0
    %214 = vmatprep.subr.mxu0 0.0
    %215 = vmatpush1.msra.mxu0 0.0
    %216 = vmatprep.subr.mxu0 0.0
    %217 = vmatpush1.msra.mxu0 0.0
    %218 = vmatprep.subr.mxu0 0.0
    %219 = vmatpush1.msra.mxu0 0.0
    %220 = vmatprep.subr.mxu0 0.0
    %221 = vmatpush1.msra.mxu0 0.0
    %222 = vmatprep.subr.mxu0 0.0
    %223 = vmatpush1.msra.mxu0 0.0
    %224 = vmatprep.subr.mxu0 0.0
    %225 = vmatpush1.msra.mxu0 0.0
    %226 = vmatprep.subr.mxu0 0.0
    %227 = vmatpush1.msra.mxu0 0.0
    %228 = vmatprep.subr.mxu0 0.0
    %229 = vmatpush1.msra.mxu0 0.0
    %230 = vmatprep.subr.mxu0 0.0
    %231 = vmatpush1.msra.mxu0 0.0
    %232 = vmatprep.subr.mxu0 0.0
    %233 = vmatpush1.msra.mxu0 0.0
    %234 = vmatprep.subr.mxu0 0.0
    %235 = vmatpush1.msra.mxu0 0.0
    %236 = vmatprep.subr.mxu0 0.0
    %237 = vmatpush1.msra.mxu0 0.0
    %238 = vmatprep.subr.mxu0 0.0
    %239 = vmatpush1.msra.mxu0 0.0
    %240 = vmatprep.subr.mxu0 0.0
    %241 = vmatpush1.msra.mxu0 0.0
    %242 = vmatprep.subr.mxu0 0.0
    %243 = vmatpush1.msra.mxu0 0.0
    %244 = vmatprep.subr.mxu0 0.0
    %245 = vmatpush1.msra.mxu0 0.0
    %246 = vmatprep.subr.mxu0 0.0
    %247 = vmatpush1.msra.mxu0 0.0
    %248 = vmatprep.subr.mxu0 0.0
    %249 = vmatpush1.msra.mxu0 0.0
    %250 = vmatprep.subr.mxu0 0.0
    %251 = vmatpush1.msra.mxu0 0.0
    %252 = vmatprep.subr.mxu0 0.0
    %253 = vmatpush1.msra.mxu0 0.0
    %254 = vmatprep.mubr.f32.mxu0 0.0
    %255 = vmatmul.mubr.f32.gmra.mrb[0].mxu0 %v45
    %v256 = vpop.f32.mrb[0].mxu0
    %v257 = vadd.f32 0.0, %v256
    %v258 = vpop.f32.mrb[0].mxu0
    %259 = vmatprep.mubr.f32.mxu0 0.0
    %260 = vmatmul.mubr.f32.gmra.mrb[0].mxu0 %v48
    %v261 = vpop.f32.mrb[0].mxu0
    %v262 = vadd.f32 0.0, %v261
    %v263 = vpop.f32.mrb[0].mxu0
    %264 = vdwg.mxu0
    %v265 = vld [vmem:[%s7] sm:$0xf]
    %v267 = vsel %vm147, %v183, 0
    %v270 = vsel %vm147, %v185, 0
    %vm272 = vcmask 1043456
    %v274 = vsel %vm272, %v265, 0
    %276 = vmatprep.subr.mxu0 0.0
    %277 = vmatpush1.msra.mxu0 %v274
    %278 = vmatprep.subr.mxu0 0.0
    %279 = vmatpush1.msra.mxu0 0.0
    %280 = vmatprep.subr.mxu0 0.0
    %281 = vmatpush1.msra.mxu0 0.0
    %282 = vmatprep.subr.mxu0 0.0
    %283 = vmatpush1.msra.mxu0 0.0
    %284 = vmatprep.subr.mxu0 0.0
    %285 = vmatpush1.msra.mxu0 0.0
    %286 = vmatprep.subr.mxu0 0.0
    %287 = vmatpush1.msra.mxu0 0.0
    %288 = vmatprep.subr.mxu0 0.0
    %289 = vmatpush1.msra.mxu0 0.0
    %290 = vmatprep.subr.mxu0 0.0
    %291 = vmatpush1.msra.mxu0 0.0
    %292 = vmatprep.subr.mxu0 0.0
    %293 = vmatpush1.msra.mxu0 0.0
    %294 = vmatprep.subr.mxu0 0.0
    %295 = vmatpush1.msra.mxu0 0.0
    %296 = vmatprep.subr.mxu0 0.0
    %297 = vmatpush1.msra.mxu0 0.0
    %298 = vmatprep.subr.mxu0 0.0
    %299 = vmatpush1.msra.mxu0 0.0
    %300 = vmatprep.subr.mxu0 0.0
    %301 = vmatpush1.msra.mxu0 0.0
    %302 = vmatprep.subr.mxu0 0.0
    %303 = vmatpush1.msra.mxu0 0.0
    %304 = vmatprep.subr.mxu0 0.0
    %305 = vmatpush1.msra.mxu0 0.0
    %306 = vmatprep.subr.mxu0 0.0
    %307 = vmatpush1.msra.mxu0 0.0
    %308 = vmatprep.subr.mxu0 0.0
    %309 = vmatpush1.msra.mxu0 0.0
    %310 = vmatprep.subr.mxu0 0.0
    %311 = vmatpush1.msra.mxu0 0.0
    %312 = vmatprep.subr.mxu0 0.0
    %313 = vmatpush1.msra.mxu0 0.0
    %314 = vmatprep.subr.mxu0 0.0
    %315 = vmatpush1.msra.mxu0 0.0
    %316 = vmatprep.subr.mxu0 0.0
    %317 = vmatpush1.msra.mxu0 0.0
    %318 = vmatprep.subr.mxu0 0.0
    %319 = vmatpush1.msra.mxu0 0.0
    %320 = vmatprep.subr.mxu0 0.0
    %321 = vmatpush1.msra.mxu0 0.0
    %322 = vmatprep.subr.mxu0 0.0
    %323 = vmatpush1.msra.mxu0 0.0
    %324 = vmatprep.subr.mxu0 0.0
    %325 = vmatpush1.msra.mxu0 0.0
    %326 = vmatprep.subr.mxu0 0.0
    %327 = vmatpush1.msra.mxu0 0.0
    %328 = vmatprep.subr.mxu0 0.0
    %329 = vmatpush1.msra.mxu0 0.0
    %330 = vmatprep.subr.mxu0 0.0
    %331 = vmatpush1.msra.mxu0 0.0
    %332 = vmatprep.subr.mxu0 0.0
    %333 = vmatpush1.msra.mxu0 0.0
    %334 = vmatprep.subr.mxu0 0.0
    %335 = vmatpush1.msra.mxu0 0.0
    %336 = vmatprep.subr.mxu0 0.0
    %337 = vmatpush1.msra.mxu0 0.0
    %338 = vmatprep.subr.mxu0 0.0
    %339 = vmatpush1.msra.mxu0 0.0
    %340 = vmatprep.mubr.f32.mxu0 0.0
    %341 = vmatmul.mubr.f32.gmra.mrb[0].mxu0 %v267
    %v342 = vpop.f32.mrb[0].mxu0
    %v343 = vadd.f32 0.0, %v342
    %v344 = vpop.f32.mrb[0].mxu0
    %345 = vmatprep.mubr.f32.mxu0 0.0
    %346 = vmatmul.mubr.f32.gmra.mrb[0].mxu0 %v270
    %v347 = vpop.f32.mrb[0].mxu0
    %v348 = vadd.f32 0.0, %v347
    %v349 = vpop.f32.mrb[0].mxu0
    %350 = vdwg.mxu0
    %v351 = vmul.f32 %v343, %v257
    %v352 = vmul.f32 %v348, %v262
    %v353 = vsel %vm43, %v351, 0.0
    %v354 = vrot.slane %v353, 4
    %v355 = vadd.f32 %v353, %v354
    %v356 = vrot.slane %v355, 2
    %v357 = vadd.f32 %v355, %v356
    %v358 = vrot.slane %v357, 1
    %v359 = vadd.f32 %v357, %v358
    %v360 = vsel %vm43, %v352, 0.0
    %v361 = vrot.slane %v360, 4
    %v362 = vadd.f32 %v360, %v361
    %v363 = vrot.slane %v362, 2
    %v364 = vadd.f32 %v362, %v363
    %v365 = vrot.slane %v364, 1
    %v366 = vadd.f32 %v364, %v365
    %v367 = vld [vmem:[%s5] sm:$0xff]
    %v368 = vld [vmem:[%s5 + $0x8] sm:$0xff]
    %v369 = vld [vmem:[%s5 + $0x10] sm:$0xff]
    %v370 = vld [vmem:[%s5 + $0x18] sm:$0xff]
    %v371 = vld [vmem:[%s6] sm:$0x1]
    %v373 = vlaneseq
    %v374 = vshrl.u32 %v373, 7
    %v375 = vsub.s32 0, %v374
    %v376 = vrot.slane %v371, %v375
    %vm380 = vcmask 1041409
    %v381 = vsel %vm380, %v366, %v359
    %v382 = vsel %vm43, %v381, 0
    %384 = vmatprep.subr.mxu0 0.0
    %385 = vmatpush1.msra.mxu0 %v367
    %386 = vmatprep.subr.mxu0 0.0
    %387 = vmatpush1.msra.mxu0 %v368
    %388 = vmatprep.subr.mxu0 0.0
    %389 = vmatpush1.msra.mxu0 %v369
    %390 = vmatprep.subr.mxu0 0.0
    %391 = vmatpush1.msra.mxu0 %v370
    %392 = vmatprep.subr.mxu0 0.0
    %393 = vmatpush1.msra.mxu0 0.0
    %394 = vmatprep.subr.mxu0 0.0
    %395 = vmatpush1.msra.mxu0 0.0
    %396 = vmatprep.subr.mxu0 0.0
    %397 = vmatpush1.msra.mxu0 0.0
    %398 = vmatprep.subr.mxu0 0.0
    %399 = vmatpush1.msra.mxu0 0.0
    %400 = vmatprep.subr.mxu0 0.0
    %401 = vmatpush1.msra.mxu0 0.0
    %402 = vmatprep.subr.mxu0 0.0
    %403 = vmatpush1.msra.mxu0 0.0
    %404 = vmatprep.subr.mxu0 0.0
    %405 = vmatpush1.msra.mxu0 0.0
    %406 = vmatprep.subr.mxu0 0.0
    %407 = vmatpush1.msra.mxu0 0.0
    %408 = vmatprep.subr.mxu0 0.0
    %409 = vmatpush1.msra.mxu0 0.0
    %410 = vmatprep.subr.mxu0 0.0
    %411 = vmatpush1.msra.mxu0 0.0
    %412 = vmatprep.subr.mxu0 0.0
    %413 = vmatpush1.msra.mxu0 0.0
    %414 = vmatprep.subr.mxu0 0.0
    %415 = vmatpush1.msra.mxu0 0.0
    %416 = vmatprep.subr.mxu0 0.0
    %417 = vmatpush1.msra.mxu0 0.0
    %418 = vmatprep.subr.mxu0 0.0
    %419 = vmatpush1.msra.mxu0 0.0
    %420 = vmatprep.subr.mxu0 0.0
    %421 = vmatpush1.msra.mxu0 0.0
    %422 = vmatprep.subr.mxu0 0.0
    %423 = vmatpush1.msra.mxu0 0.0
    %424 = vmatprep.subr.mxu0 0.0
    %425 = vmatpush1.msra.mxu0 0.0
    %426 = vmatprep.subr.mxu0 0.0
    %427 = vmatpush1.msra.mxu0 0.0
    %428 = vmatprep.subr.mxu0 0.0
    %429 = vmatpush1.msra.mxu0 0.0
    %430 = vmatprep.subr.mxu0 0.0
    %431 = vmatpush1.msra.mxu0 0.0
    %432 = vmatprep.subr.mxu0 0.0
    %433 = vmatpush1.msra.mxu0 0.0
    %434 = vmatprep.subr.mxu0 0.0
    %435 = vmatpush1.msra.mxu0 0.0
    %436 = vmatprep.subr.mxu0 0.0
    %437 = vmatpush1.msra.mxu0 0.0
    %438 = vmatprep.subr.mxu0 0.0
    %439 = vmatpush1.msra.mxu0 0.0
    %440 = vmatprep.subr.mxu0 0.0
    %441 = vmatpush1.msra.mxu0 0.0
    %442 = vmatprep.subr.mxu0 0.0
    %443 = vmatpush1.msra.mxu0 0.0
    %444 = vmatprep.subr.mxu0 0.0
    %445 = vmatpush1.msra.mxu0 0.0
    %446 = vmatprep.subr.mxu0 0.0
    %447 = vmatpush1.msra.mxu0 0.0
    %448 = vmatprep.mubr.f32.mxu0 0.0
    %449 = vmatmul.mubr.f32.gmra.mrb[0].mxu0 %v382
    %v450 = vpop.f32.mrb[0].mxu0
    %v451 = vadd.f32 %v376, %v450
    %v452 = vpop.f32.mrb[0].mxu0
    %453 = vdwg.mxu0
    %vm454 = vcmask 254976
    %455 = vst.msk [vmem:[#allocation2] sm:$0x3] %vm454, %v451
    // Predicated region
    $region34: #{_seq2vec_attention_impl.1} parent=1 // pred_check
      _
    $region35: #{_seq2vec_attention_impl.1} parent=1 // pred_check_branch
      %457 = sbr.rel (0) target = $region37
    $region36: #{_seq2vec_attention_impl.1} parent=1 // pred_region
      %s459 = ssub.s32 32, 32
      %460 = vsyncadd [#allocation3], %s459
      %s462 = sshll.u32 [#allocation2], 4
      %s463 = int_to_ptr.vmem [resolvable:$true] %s462
      %465 = dma.vmem_to_hbm [thread:$0]  %s463, 32, %s8, [#allocation3]
    $region37: #{_seq2vec_attention_impl.1} parent=1 // pred_fallthru
      _
    // Predicated region
    $region38: #{_seq2vec_attention_impl.1} parent=1 // pred_check
      _
    $region39: #{_seq2vec_attention_impl.1} parent=1 // pred_check_branch
      %467 = sbr.rel (0) target = $region41
    $region40: #{_seq2vec_attention_impl.1} parent=1 // pred_region
      %468 = dma.done [#allocation3], 32
    $region41: #{_seq2vec_attention_impl.1} parent=1 // pred_fallthru
      _
    %469 = vsyncpa [#allocation3], 1

</llo_original>
